<compile_context>
chip_gen: v5e
topology: v5e:2x2
jax: 0.10.0
libtpu: 0.0.40
codegen_flags: <defaults>
</compile_context>

<pallas_src>
import jax
import jax.numpy as jnp
from jax.experimental import pallas as pl
from jax.experimental.pallas import tpu as pltpu

EPS = 1e-6
NUM_STATES = 4
SYMBOLS = ('a', 'b')
ACCEPTING = (1, 3)       # automaton['accepting']

# Transposed-DFA formulas per next-state, already simplified (fuzzy/prob):
#   f[ns] = OR over previous states ps of (ps_var AND transition constraint)
# AST nodes: ('var', name, negated) | ('true',) | ('false',)
#            | ('and', [children]) | ('or', [children])
# (Used by the pure-JAX reference; the kernel unrolls the CSE'd equivalent.)
FORMULAS = {
    '0': ('or', [('and', [('var', 'ps_0', False), ('var', 'a', True), ('var', 'b', True)]),
                 ('and', [('var', 'ps_2', False), ('var', 'a', True)])]),
    '1': ('and', [('var', 'ps_0', False), ('var', 'a', False)]),
    '2': ('or', [('and', [('var', 'ps_0', False), ('var', 'b', False), ('var', 'a', True)]),
                 ('and', [('var', 'ps_2', False), ('var', 'a', False), ('var', 'b', True)])]),
    '3': ('or', [('and', [('var', 'ps_1', False), ('var', 'b', False)]),
                 ('and', [('var', 'ps_2', False), ('var', 'a', False), ('var', 'b', False)]),
                 ('var', 'ps_3', False)]),
}

# nn.Parameter(torch.ones(1)) -> deterministic init
TEMPERATURE_LOGIT = jnp.ones((1,), jnp.float32)

MAX_TILE_ROWS = 512      # 512 * 128 = 64K batch elements per grid step


def _round_up(x, m):
    return ((x + m - 1) // m) * m


def _eval_formula(node, weights, shape):
    """Prob-semiring evaluation mirroring NodeModule/ProdModule/SumModule."""
    kind = node[0]
    if kind == 'var':
        _, name, negated = node
        w = weights[name]
        return 1.0 - w if negated else w           # NodeModule (negated / plain)
    if kind == 'true':
        return jnp.ones(shape, jnp.float32)        # NodeModule 'True'
    if kind == 'false':
        return jnp.zeros(shape, jnp.float32)       # NodeModule 'False'
    vals = [_eval_formula(c, weights, shape) for c in node[1]]
    out = vals[0]
    if kind == 'and':                              # ProdModule: cumprod(...)[..., -1]
        for v in vals[1:]:
            out = out * v
    else:                                          # SumModule: sum over children
        for v in vals[1:]:
            out = out + v
    return out


def dfa_prob_kernel(inv_t_ref, s0_ref, a_ref, b_ref, out_ref):
    """One batch tile; batch is packed as dense (TR, 128) planes.

    inv_t_ref : (1,) f32 in SMEM, precomputed 1/t
    s0_ref    : (NUM_STATES, TR, 128)  previous-state probabilities
    a_ref     : (TR, 128)              symbol 'a' probabilities
    b_ref     : (TR, 128)              symbol 'b' probabilities
    out_ref   : (2*NUM_STATES+1, TR, 128) fused output slab:
                planes [0, S)   -> log_next_state
                planes [S, 2S)  -> next_state
                plane  2S       -> accepted
    """
    S = NUM_STATES
    inv_t = inv_t_ref[0]                              # scalar 1/t

    # One clip of the whole block (hoisted), then dense plane extraction.
    s0c = jnp.clip(s0_ref[...], EPS, 1.0 - EPS)       # (S, TR, 128)
    ps0 = s0c[0]
    ps1 = s0c[1]
    ps2 = s0c[2]
    ps3 = s0c[3]

    a = a_ref[...]                                    # (TR, 128)
    b = b_ref[...]
    not_a = 1.0 - a
    not_b = 1.0 - b

    # Shared products hoisted out of the unrolled formulas.
    p0_na = ps0 * not_a
    p2_a = ps2 * a

    # Prob-semiring circuit (AND = product, OR = sum, NOT = 1-x):
    f0 = p0_na * not_b + ps2 * not_a                  # next state 0
    f1 = ps0 * a                                      # next state 1
    f2 = p0_na * b + p2_a * not_b                     # next state 2
    f3 = ps1 * b + p2_a * b + ps3                     # next state 3

    # clamp -> log -> temperature scale (multiply by 1/t, no divide)
    x = [jnp.log(jnp.clip(f, EPS, 1.0 - EPS)) * inv_t for f in (f0, f1, f2, f3)]

    # Softmax over the 4 state planes: fixed-depth tree of VPU max/add ops.
    # Max-subtraction is KEPT: a small learned temperature (large 1/t) could
    # otherwise underflow all four exp terms.
    m = jnp.maximum(jnp.maximum(x[0], x[1]), jnp.maximum(x[2], x[3]))
    z = [xi - m for xi in x]
    e = [jnp.exp(zi) for zi in z]
    se = (e[0] + e[1]) + (e[2] + e[3])

    # EUP approx reciprocal + one Newton step (near-f32 accuracy, no vdiv).
    inv0 = pl.reciprocal(se, approx=True)
    inv_se = inv0 * (2.0 - se * inv0)
    log_se = jnp.log(se)

    ns = [e[i] * inv_se for i in range(S)]            # F.softmax

    # Dense full-width plane stores into the fused output slab.
    for i in range(S):
        out_ref[i] = z[i] - log_se                    # F.log_softmax
    for i in range(S):
        out_ref[S + i] = ns[i]

    acc = ns[ACCEPTING[0]]
    for k in ACCEPTING[1:]:
        acc = acc + ns[k]
    out_ref[2 * S] = acc                              # accepted


def dfa_prob_forward(log_s0, s0, constraints, *, max_tile_rows=MAX_TILE_ROWS):
    """Mirrors DFAProb.forward for semiring='prob' (log_s0 is unused there)."""
    del log_s0
    B, S = s0.shape
    assert S == NUM_STATES

    # Tile sizing: batch packed as (rows, 128); tile = (tile_rows, 128).
    rows_needed = pl.cdiv(max(B, 1), 128)
    if rows_needed <= 8:
        tile_rows = 8
    elif rows_needed <= max_tile_rows:
        # Split into >= 2 grid steps so v7x's two TensorCores both get work.
        tile_rows = _round_up(pl.cdiv(rows_needed, 2), 8)
    else:
        tile_rows = max_tile_rows                     # 64K elems/step; ~7.5 MiB
                                                      # double-buffered (v5e-safe)
    b_pad = _round_up(B, tile_rows * 128)
    n_rows = b_pad // 128
    grid = (n_rows // tile_rows,)

    # s0: (B, S) -> (S, B) transpose (the one unavoidable copy), pad, then a
    # free contiguous reshape to (S, rows, 128).
    s0_planes = jnp.transpose(s0.astype(jnp.float32))                   # (S, B)
    if b_pad != B:
        s0_planes = jnp.pad(s0_planes, ((0, 0), (0, b_pad - B)))
    s0_planes = s0_planes.reshape(S, n_rows, 128)

    def _to_planes(v):
        v = v.astype(jnp.float32).reshape(-1)
        if b_pad != B:
            v = jnp.pad(v, (0, b_pad - B))
        return v.reshape(n_rows, 128)                 # free contiguous reshape

    a_planes = _to_planes(constraints['a'])
    b_planes = _to_planes(constraints['b'])

    # calibrate=True: t = relu(temperature_logit) + eps; pass 1/t to the kernel.
    inv_t = (1.0 / (jax.nn.relu(TEMPERATURE_LOGIT) + EPS)).astype(jnp.float32)

    n_out = 2 * S + 1
    cost = pl.CostEstimate(flops=40 * b_pad,
                           transcendentals=10 * b_pad,
                           bytes_accessed=60 * b_pad)

    out = pl.pallas_call(
        dfa_prob_kernel,
        out_shape=jax.ShapeDtypeStruct((n_out, n_rows, 128), jnp.float32),
        grid=grid,
        in_specs=[
            pl.BlockSpec(memory_space=pltpu.MemorySpace.SMEM),           # 1/t
            pl.BlockSpec((S, tile_rows, 128), lambda i: (0, i, 0)),      # s0
            pl.BlockSpec((tile_rows, 128), lambda i: (i, 0)),            # a
            pl.BlockSpec((tile_rows, 128), lambda i: (i, 0)),            # b
        ],
        out_specs=pl.BlockSpec((n_out, tile_rows, 128), lambda i: (0, i, 0)),
        compiler_params=pltpu.CompilerParams(
            dimension_semantics=("parallel",)),       # 2 TCs on v7x
        cost_estimate=cost,
    )(inv_t, s0_planes, a_planes, b_planes)

    # Unpack the fused slab back to the (B, S) forward contract.
    # (Padded batch lanes hold finite but meaningless values; sliced off here.)
    out2d = out.reshape(n_out, b_pad)
    log_ns = jnp.transpose(out2d[0:S, :B])            # (B, S)
    ns = jnp.transpose(out2d[S:2 * S, :B])            # (B, S)
    acc = out2d[2 * S, :B]                            # (B,)
    return log_ns, ns, acc


def _reference(log_s0, s0, constraints):
    """Pure-JAX reference of the same forward for a sanity check."""
    del log_s0
    t = jax.nn.relu(TEMPERATURE_LOGIT) + EPS
    B, S = s0.shape
    weights = {'ps_{}'.format(i): jnp.clip(s0[:, i:i + 1], EPS, 1.0 - EPS)
               for i in range(S)}
    for sym in SYMBOLS:
        weights[sym] = constraints[sym][:, None]
    cols = [_eval_formula(FORMULAS[k], weights, (B, 1)) for k in sorted(FORMULAS.keys())]
    unnorm = jnp.clip(jnp.concatenate(cols, axis=-1), EPS, 1.0 - EPS)
    x = jnp.log(unnorm) / t
    ns = jax.nn.softmax(x, axis=-1)
    log_ns = jax.nn.log_softmax(x, axis=-1)
    acc = jnp.sum(ns[:, jnp.array(ACCEPTING)], axis=-1)
    return log_ns, ns, acc


if __name__ == "__main__":
    key = jax.random.PRNGKey(0)
    B = 8
    k1, k2, k3 = jax.random.split(key, 3)

    s0 = jax.nn.softmax(jax.random.normal(k1, (B, NUM_STATES), jnp.float32), axis=-1)
    log_s0 = jnp.log(s0)
    constraints = {
        'a': jax.nn.sigmoid(jax.random.normal(k2, (B,), jnp.float32)),
        'b': jax.nn.sigmoid(jax.random.normal(k3, (B,), jnp.float32)),
    }

    log_ns, ns, acc = dfa_prob_forward(log_s0, s0, constraints)
    jax.block_until_ready((log_ns, ns, acc))

    ref_log_ns, ref_ns, ref_acc = _reference(log_s0, s0, constraints)
    assert jnp.allclose(log_ns, ref_log_ns, atol=1e-4), "log_next_state mismatch"
    assert jnp.allclose(ns, ref_ns, atol=1e-4), "next_state mismatch"
    assert jnp.allclose(acc, ref_acc, atol=1e-4), "accepted mismatch"

    print("KERNEL_OK")
</pallas_src>

<mosaic_0001>
module attributes {stable_mosaic.version = 11 : i64} {
  func.func @dfa_prob_kernel(%arg0: i32, %arg1: memref<1xf32, #tpu.memory_space<smem>>, %arg2: memref<4x8x128xf32, #tpu.memory_space<vmem>>, %arg3: memref<8x128xf32, #tpu.memory_space<vmem>>, %arg4: memref<8x128xf32, #tpu.memory_space<vmem>>, %arg5: memref<9x8x128xf32, #tpu.memory_space<vmem>>) attributes {dimension_semantics = [#tpu.dimension_semantics<parallel>], iteration_bounds = array<i64: 1>, scalar_prefetch = 0 : i64, scratch_operands = 0 : i64, tpu.core_type = #tpu.core_type<tc>, window_params = [{transform_indices = @transform_0, window_bounds = array<i64: 1>}, {transform_indices = @transform_1, window_bounds = array<i64: 4, 8, 128>}, {transform_indices = @transform_2, window_bounds = array<i64: 8, 128>}, {transform_indices = @transform_3, window_bounds = array<i64: 8, 128>}, {transform_indices = @transform_4, window_bounds = array<i64: 9, 8, 128>}]} {
    %c0 = arith.constant 0 : index
    %0 = memref.load %arg1[%c0] : memref<1xf32, #tpu.memory_space<smem>>
    %c0_0 = arith.constant 0 : index
    %c0_1 = arith.constant 0 : index
    %c0_2 = arith.constant 0 : index
    %1 = vector.load %arg2[%c0_0, %c0_1, %c0_2] : memref<4x8x128xf32, #tpu.memory_space<vmem>>, vector<4x8x128xf32>
    %cst = arith.constant 9.99999997E-7 : f32
    %cst_3 = arith.constant 0.999998986 : f32
    %2 = vector.broadcast %cst : f32 to vector<4x8x128xf32>
    %3 = arith.maximumf %2, %1 : vector<4x8x128xf32>
    %4 = vector.broadcast %cst_3 : f32 to vector<4x8x128xf32>
    %5 = arith.minimumf %4, %3 : vector<4x8x128xf32>
    %6 = vector.extract_strided_slice %5 {offsets = [0, 0, 0], sizes = [1, 8, 128], strides = [1, 1, 1]} : vector<4x8x128xf32> to vector<1x8x128xf32>
    %7 = vector.shape_cast %6 : vector<1x8x128xf32> to vector<8x128xf32>
    %8 = vector.extract_strided_slice %5 {offsets = [1, 0, 0], sizes = [1, 8, 128], strides = [1, 1, 1]} : vector<4x8x128xf32> to vector<1x8x128xf32>
    %9 = vector.shape_cast %8 : vector<1x8x128xf32> to vector<8x128xf32>
    %10 = vector.extract_strided_slice %5 {offsets = [2, 0, 0], sizes = [1, 8, 128], strides = [1, 1, 1]} : vector<4x8x128xf32> to vector<1x8x128xf32>
    %11 = vector.shape_cast %10 : vector<1x8x128xf32> to vector<8x128xf32>
    %12 = vector.extract_strided_slice %5 {offsets = [3, 0, 0], sizes = [1, 8, 128], strides = [1, 1, 1]} : vector<4x8x128xf32> to vector<1x8x128xf32>
    %13 = vector.shape_cast %12 : vector<1x8x128xf32> to vector<8x128xf32>
    %c0_4 = arith.constant 0 : index
    %c0_5 = arith.constant 0 : index
    %14 = vector.load %arg3[%c0_4, %c0_5] : memref<8x128xf32, #tpu.memory_space<vmem>>, vector<8x128xf32>
    %c0_6 = arith.constant 0 : index
    %c0_7 = arith.constant 0 : index
    %15 = vector.load %arg4[%c0_6, %c0_7] : memref<8x128xf32, #tpu.memory_space<vmem>>, vector<8x128xf32>
    %cst_8 = arith.constant 1.000000e+00 : f32
    %16 = vector.broadcast %cst_8 : f32 to vector<8x128xf32>
    %17 = arith.subf %16, %14 : vector<8x128xf32>
    %cst_9 = arith.constant 1.000000e+00 : f32
    %18 = vector.broadcast %cst_9 : f32 to vector<8x128xf32>
    %19 = arith.subf %18, %15 : vector<8x128xf32>
    %20 = arith.mulf %7, %17 : vector<8x128xf32>
    %21 = arith.mulf %11, %14 : vector<8x128xf32>
    %22 = arith.mulf %20, %19 : vector<8x128xf32>
    %23 = arith.mulf %11, %17 : vector<8x128xf32>
    %24 = arith.addf %22, %23 : vector<8x128xf32>
    %25 = arith.mulf %7, %14 : vector<8x128xf32>
    %26 = arith.mulf %20, %15 : vector<8x128xf32>
    %27 = arith.mulf %21, %19 : vector<8x128xf32>
    %28 = arith.addf %26, %27 : vector<8x128xf32>
    %29 = arith.mulf %9, %15 : vector<8x128xf32>
    %30 = arith.mulf %21, %15 : vector<8x128xf32>
    %31 = arith.addf %29, %30 : vector<8x128xf32>
    %32 = arith.addf %31, %13 : vector<8x128xf32>
    %cst_10 = arith.constant 9.99999997E-7 : f32
    %cst_11 = arith.constant 0.999998986 : f32
    %33 = vector.broadcast %cst_10 : f32 to vector<8x128xf32>
    %34 = arith.maximumf %33, %24 : vector<8x128xf32>
    %35 = vector.broadcast %cst_11 : f32 to vector<8x128xf32>
    %36 = arith.minimumf %35, %34 : vector<8x128xf32>
    %37 = math.log %36 : vector<8x128xf32>
    %38 = vector.broadcast %0 : f32 to vector<8x128xf32>
    %39 = arith.mulf %37, %38 : vector<8x128xf32>
    %cst_12 = arith.constant 9.99999997E-7 : f32
    %cst_13 = arith.constant 0.999998986 : f32
    %40 = vector.broadcast %cst_12 : f32 to vector<8x128xf32>
    %41 = arith.maximumf %40, %25 : vector<8x128xf32>
    %42 = vector.broadcast %cst_13 : f32 to vector<8x128xf32>
    %43 = arith.minimumf %42, %41 : vector<8x128xf32>
    %44 = math.log %43 : vector<8x128xf32>
    %45 = vector.broadcast %0 : f32 to vector<8x128xf32>
    %46 = arith.mulf %44, %45 : vector<8x128xf32>
    %cst_14 = arith.constant 9.99999997E-7 : f32
    %cst_15 = arith.constant 0.999998986 : f32
    %47 = vector.broadcast %cst_14 : f32 to vector<8x128xf32>
    %48 = arith.maximumf %47, %28 : vector<8x128xf32>
    %49 = vector.broadcast %cst_15 : f32 to vector<8x128xf32>
    %50 = arith.minimumf %49, %48 : vector<8x128xf32>
    %51 = math.log %50 : vector<8x128xf32>
    %52 = vector.broadcast %0 : f32 to vector<8x128xf32>
    %53 = arith.mulf %51, %52 : vector<8x128xf32>
    %cst_16 = arith.constant 9.99999997E-7 : f32
    %cst_17 = arith.constant 0.999998986 : f32
    %54 = vector.broadcast %cst_16 : f32 to vector<8x128xf32>
    %55 = arith.maximumf %54, %32 : vector<8x128xf32>
    %56 = vector.broadcast %cst_17 : f32 to vector<8x128xf32>
    %57 = arith.minimumf %56, %55 : vector<8x128xf32>
    %58 = math.log %57 : vector<8x128xf32>
    %59 = vector.broadcast %0 : f32 to vector<8x128xf32>
    %60 = arith.mulf %58, %59 : vector<8x128xf32>
    %61 = arith.maximumf %39, %46 : vector<8x128xf32>
    %62 = arith.maximumf %53, %60 : vector<8x128xf32>
    %63 = arith.maximumf %61, %62 : vector<8x128xf32>
    %64 = arith.subf %39, %63 : vector<8x128xf32>
    %65 = arith.subf %46, %63 : vector<8x128xf32>
    %66 = arith.subf %53, %63 : vector<8x128xf32>
    %67 = arith.subf %60, %63 : vector<8x128xf32>
    %68 = math.exp %64 : vector<8x128xf32>
    %69 = math.exp %65 : vector<8x128xf32>
    %70 = math.exp %66 : vector<8x128xf32>
    %71 = math.exp %67 : vector<8x128xf32>
    %72 = arith.addf %68, %69 : vector<8x128xf32>
    %73 = arith.addf %70, %71 : vector<8x128xf32>
    %74 = arith.addf %72, %73 : vector<8x128xf32>
    %75 = tpu.reciprocal %74 {approx = true} : vector<8x128xf32> -> vector<8x128xf32>
    %76 = arith.mulf %74, %75 : vector<8x128xf32>
    %cst_18 = arith.constant 2.000000e+00 : f32
    %77 = vector.broadcast %cst_18 : f32 to vector<8x128xf32>
    %78 = arith.subf %77, %76 : vector<8x128xf32>
    %79 = arith.mulf %75, %78 : vector<8x128xf32>
    %80 = math.log %74 : vector<8x128xf32>
    %81 = arith.mulf %68, %79 : vector<8x128xf32>
    %82 = arith.mulf %69, %79 : vector<8x128xf32>
    %83 = arith.mulf %70, %79 : vector<8x128xf32>
    %84 = arith.mulf %71, %79 : vector<8x128xf32>
    %85 = arith.subf %64, %80 : vector<8x128xf32>
    %c0_19 = arith.constant 0 : index
    %c0_20 = arith.constant 0 : index
    %c0_21 = arith.constant 0 : index
    %86 = vector.load %arg5[%c0_19, %c0_20, %c0_21] : memref<9x8x128xf32, #tpu.memory_space<vmem>>, vector<1x8x128xf32>
    %87 = vector.shape_cast %86 : vector<1x8x128xf32> to vector<8x128xf32>
    %88 = vector.shape_cast %85 : vector<8x128xf32> to vector<1x8x128xf32>
    tpu.vector_store %arg5[%c0_19, %c0_20, %c0_21], %88 {strides = array<i32>} : memref<9x8x128xf32, #tpu.memory_space<vmem>>, vector<1x8x128xf32>,
    %89 = arith.subf %65, %80 : vector<8x128xf32>
    %c1 = arith.constant 1 : index
    %c0_22 = arith.constant 0 : index
    %c0_23 = arith.constant 0 : index
    %90 = vector.load %arg5[%c1, %c0_22, %c0_23] : memref<9x8x128xf32, #tpu.memory_space<vmem>>, vector<1x8x128xf32>
    %91 = vector.shape_cast %90 : vector<1x8x128xf32> to vector<8x128xf32>
    %92 = vector.shape_cast %89 : vector<8x128xf32> to vector<1x8x128xf32>
    tpu.vector_store %arg5[%c1, %c0_22, %c0_23], %92 {strides = array<i32>} : memref<9x8x128xf32, #tpu.memory_space<vmem>>, vector<1x8x128xf32>,
    %93 = arith.subf %66, %80 : vector<8x128xf32>
    %c2 = arith.constant 2 : index
    %c0_24 = arith.constant 0 : index
    %c0_25 = arith.constant 0 : index
    %94 = vector.load %arg5[%c2, %c0_24, %c0_25] : memref<9x8x128xf32, #tpu.memory_space<vmem>>, vector<1x8x128xf32>
    %95 = vector.shape_cast %94 : vector<1x8x128xf32> to vector<8x128xf32>
    %96 = vector.shape_cast %93 : vector<8x128xf32> to vector<1x8x128xf32>
    tpu.vector_store %arg5[%c2, %c0_24, %c0_25], %96 {strides = array<i32>} : memref<9x8x128xf32, #tpu.memory_space<vmem>>, vector<1x8x128xf32>,
    %97 = arith.subf %67, %80 : vector<8x128xf32>
    %c3 = arith.constant 3 : index
    %c0_26 = arith.constant 0 : index
    %c0_27 = arith.constant 0 : index
    %98 = vector.load %arg5[%c3, %c0_26, %c0_27] : memref<9x8x128xf32, #tpu.memory_space<vmem>>, vector<1x8x128xf32>
    %99 = vector.shape_cast %98 : vector<1x8x128xf32> to vector<8x128xf32>
    %100 = vector.shape_cast %97 : vector<8x128xf32> to vector<1x8x128xf32>
    tpu.vector_store %arg5[%c3, %c0_26, %c0_27], %100 {strides = array<i32>} : memref<9x8x128xf32, #tpu.memory_space<vmem>>, vector<1x8x128xf32>,
    %c4 = arith.constant 4 : index
    %c0_28 = arith.constant 0 : index
    %c0_29 = arith.constant 0 : index
    %101 = vector.load %arg5[%c4, %c0_28, %c0_29] : memref<9x8x128xf32, #tpu.memory_space<vmem>>, vector<1x8x128xf32>
    %102 = vector.shape_cast %101 : vector<1x8x128xf32> to vector<8x128xf32>
    %103 = vector.shape_cast %81 : vector<8x128xf32> to vector<1x8x128xf32>
    tpu.vector_store %arg5[%c4, %c0_28, %c0_29], %103 {strides = array<i32>} : memref<9x8x128xf32, #tpu.memory_space<vmem>>, vector<1x8x128xf32>,
    %c5 = arith.constant 5 : index
    %c0_30 = arith.constant 0 : index
    %c0_31 = arith.constant 0 : index
    %104 = vector.load %arg5[%c5, %c0_30, %c0_31] : memref<9x8x128xf32, #tpu.memory_space<vmem>>, vector<1x8x128xf32>
    %105 = vector.shape_cast %104 : vector<1x8x128xf32> to vector<8x128xf32>
    %106 = vector.shape_cast %82 : vector<8x128xf32> to vector<1x8x128xf32>
    tpu.vector_store %arg5[%c5, %c0_30, %c0_31], %106 {strides = array<i32>} : memref<9x8x128xf32, #tpu.memory_space<vmem>>, vector<1x8x128xf32>,
    %c6 = arith.constant 6 : index
    %c0_32 = arith.constant 0 : index
    %c0_33 = arith.constant 0 : index
    %107 = vector.load %arg5[%c6, %c0_32, %c0_33] : memref<9x8x128xf32, #tpu.memory_space<vmem>>, vector<1x8x128xf32>
    %108 = vector.shape_cast %107 : vector<1x8x128xf32> to vector<8x128xf32>
    %109 = vector.shape_cast %83 : vector<8x128xf32> to vector<1x8x128xf32>
    tpu.vector_store %arg5[%c6, %c0_32, %c0_33], %109 {strides = array<i32>} : memref<9x8x128xf32, #tpu.memory_space<vmem>>, vector<1x8x128xf32>,
    %c7 = arith.constant 7 : index
    %c0_34 = arith.constant 0 : index
    %c0_35 = arith.constant 0 : index
    %110 = vector.load %arg5[%c7, %c0_34, %c0_35] : memref<9x8x128xf32, #tpu.memory_space<vmem>>, vector<1x8x128xf32>
    %111 = vector.shape_cast %110 : vector<1x8x128xf32> to vector<8x128xf32>
    %112 = vector.shape_cast %84 : vector<8x128xf32> to vector<1x8x128xf32>
    tpu.vector_store %arg5[%c7, %c0_34, %c0_35], %112 {strides = array<i32>} : memref<9x8x128xf32, #tpu.memory_space<vmem>>, vector<1x8x128xf32>,
    %113 = arith.addf %82, %84 : vector<8x128xf32>
    %c8 = arith.constant 8 : index
    %c0_36 = arith.constant 0 : index
    %c0_37 = arith.constant 0 : index
    %114 = vector.load %arg5[%c8, %c0_36, %c0_37] : memref<9x8x128xf32, #tpu.memory_space<vmem>>, vector<1x8x128xf32>
    %115 = vector.shape_cast %114 : vector<1x8x128xf32> to vector<8x128xf32>
    %116 = vector.shape_cast %113 : vector<8x128xf32> to vector<1x8x128xf32>
    tpu.vector_store %arg5[%c8, %c0_36, %c0_37], %116 {strides = array<i32>} : memref<9x8x128xf32, #tpu.memory_space<vmem>>, vector<1x8x128xf32>,
    return
  }
  func.func @transform_0(%arg0: i32) -> i32 {
    %c0_i32 = arith.constant 0 : i32
    %c0_i32_0 = arith.constant 0 : i32
    return %c0_i32 : i32
  }
  func.func @transform_1(%arg0: i32) -> (i32, i32, i32) {
    %c0_i32 = arith.constant 0 : i32
    %c0_i32_0 = arith.constant 0 : i32
    %c0_i32_1 = arith.constant 0 : i32
    return %c0_i32, %arg0, %c0_i32_0 : i32, i32, i32
  }
  func.func @transform_2(%arg0: i32) -> (i32, i32) {
    %c0_i32 = arith.constant 0 : i32
    %c0_i32_0 = arith.constant 0 : i32
    return %arg0, %c0_i32 : i32, i32
  }
  func.func @transform_3(%arg0: i32) -> (i32, i32) {
    %c0_i32 = arith.constant 0 : i32
    %c0_i32_0 = arith.constant 0 : i32
    return %arg0, %c0_i32 : i32, i32
  }
  func.func @transform_4(%arg0: i32) -> (i32, i32, i32) {
    %c0_i32 = arith.constant 0 : i32
    %c0_i32_0 = arith.constant 0 : i32
    %c0_i32_1 = arith.constant 0 : i32
    return %c0_i32, %arg0, %c0_i32_0 : i32, i32, i32
  }
}

</mosaic_0001>

<llo_original>
// kernel: tpu_custom_call.1
$region0: #{tpu_custom_call.1}
  #allocation0 [shape = 'u32[]', space=smem, size = 0x4, offset = 0x4, fixed_abs, tag = 'smem constant byte address 0x4 - core index']
  #allocation1 [shape = 'u32[72,128]{1,0:T(1,128)}', space=vmem, size = 0x9000, scoped, tag = 'internal scratch']
  #allocation2 [shape = 'f32[1]{0:T(128)S(6)}', space=smem, size = 0x200, scoped, tag = 'scoped memory for tpu_custom_call.1']
  %s0 = inlined_call_operand.<no memory space> [shape: f32[1], index: 0, kind: input, shape index: {}]
  %s1 = inlined_call_operand.hbm [shape: f32[4,8,128], index: 1, kind: input, shape index: {}]
  %s2 = inlined_call_operand.hbm [shape: f32[8,128], index: 2, kind: input, shape index: {}]
  %s3 = inlined_call_operand.hbm [shape: f32[8,128], index: 3, kind: input, shape index: {}]
  %s4 = inlined_call_operand.hbm [shape: f32[9,8,128], index: 4, kind: output, shape index: {}]
  %s5 = sld [smem:[#allocation0]]
  $region38: #{tpu_custom_call.1} parent=0
    _
  %s7 = ssub.s32 1, %s5
  %s8 = scalar_select 0, %s7, %s5
  %9 = sst [smem:[#allocation2]] %s0
  $region1: #{tpu_custom_call.1} parent=0
    #allocation3 [shape = 'u8[16384]{0}', space=vmem, size = 0x4000, scoped, tag = 'input window, operand 1, single buffered']
    #allocation4 [shape = 's32[1]{0}', space=sflag, size = 0x4, scoped, tag = 'scoped memory for tpu_custom_call.1']
    #allocation5 [shape = 's32[1]{0}', space=sflag, size = 0x4, scoped, tag = 'scoped memory for tpu_custom_call.1']
    #allocation6 [shape = 'u8[4096]{0}', space=vmem, size = 0x1000, scoped, tag = 'input window, operand 2, single buffered']
    #allocation7 [shape = 's32[1]{0}', space=sflag, size = 0x4, scoped, tag = 'scoped memory for tpu_custom_call.1']
    #allocation8 [shape = 'u8[4096]{0}', space=vmem, size = 0x1000, scoped, tag = 'input window, operand 3, single buffered']
    #allocation9 [shape = 'u8[36864]{0}', space=vmem, size = 0x9000, scoped, tag = 'output window, operand 0, single buffered']
    %10 = vsyncpa [#allocation4], 0
    %11 = vsyncpa [#allocation7], 0
    %12 = vsyncpa [#allocation5], 0
    // Predicated region
    $region2: #{tpu_custom_call.1} parent=1 // pred_check
      _
    $region3: #{tpu_custom_call.1} parent=1 // pred_check_branch
      %14 = sbr.rel (0) target = $region5
    $region4: #{tpu_custom_call.1} parent=1 // pred_region
      _
    $region5: #{tpu_custom_call.1} parent=1 // pred_fallthru
      _
    // Predicated region
    $region6: #{tpu_custom_call.1} parent=1 // pred_check
      _
    $region7: #{tpu_custom_call.1} parent=1 // pred_check_branch
      %16 = sbr.rel (0) target = $region9
    $region8: #{tpu_custom_call.1} parent=1 // pred_region
      %18 = vsyncadd [#allocation4], 0
      %s19 = sshll.u32 %s1, 4
      %s20 = int_to_ptr.hbm [resolvable:$true] %s19
      %s21 = sshll.u32 [#allocation3], 4
      %s22 = int_to_ptr.vmem [resolvable:$true] %s21
      %27 = dma.hbm_to_vmem [thread:$0]  %s20, 512, %s22, [#allocation4], 128, 128, 8
    $region9: #{tpu_custom_call.1} parent=1 // pred_fallthru
      _
    // Predicated region
    $region10: #{tpu_custom_call.1} parent=1 // pred_check
      _
    $region11: #{tpu_custom_call.1} parent=1 // pred_check_branch
      %29 = sbr.rel (0) target = $region13
    $region12: #{tpu_custom_call.1} parent=1 // pred_region
      %31 = vsyncadd [#allocation7], 0
      %s33 = sshll.u32 %s2, 4
      %s34 = int_to_ptr.hbm [resolvable:$true] %s33
      %s35 = sshll.u32 [#allocation6], 4
      %s36 = int_to_ptr.vmem [resolvable:$true] %s35
      %38 = dma.hbm_to_vmem [thread:$0]  %s34, 128, %s36, [#allocation7]
    $region13: #{tpu_custom_call.1} parent=1 // pred_fallthru
      _
    // Predicated region
    $region14: #{tpu_custom_call.1} parent=1 // pred_check
      _
    $region15: #{tpu_custom_call.1} parent=1 // pred_check_branch
      %40 = sbr.rel (0) target = $region17
    $region16: #{tpu_custom_call.1} parent=1 // pred_region
      %42 = vsyncadd [#allocation7], 0
      %s44 = sshll.u32 %s3, 4
      %s45 = int_to_ptr.hbm [resolvable:$true] %s44
      %s46 = sshll.u32 [#allocation8], 4
      %s47 = int_to_ptr.vmem [resolvable:$true] %s46
      %49 = dma.hbm_to_vmem [thread:$0]  %s45, 128, %s47, [#allocation7]
    $region17: #{tpu_custom_call.1} parent=1 // pred_fallthru
      _
    // Predicated region
    $region18: #{tpu_custom_call.1} parent=1 // pred_check
      _
    $region19: #{tpu_custom_call.1} parent=1 // pred_check_branch
      %51 = sbr.rel (0) target = $region21
    $region20: #{tpu_custom_call.1} parent=1 // pred_region
      %53 = dma.done [#allocation4], 512
    $region21: #{tpu_custom_call.1} parent=1 // pred_fallthru
      _
    // Predicated region
    $region22: #{tpu_custom_call.1} parent=1 // pred_check
      _
    $region23: #{tpu_custom_call.1} parent=1 // pred_check_branch
      %55 = sbr.rel (0) target = $region25
    $region24: #{tpu_custom_call.1} parent=1 // pred_region
      %57 = dma.done [#allocation7], 128
    $region25: #{tpu_custom_call.1} parent=1 // pred_fallthru
      _
    // Predicated region
    $region26: #{tpu_custom_call.1} parent=1 // pred_check
      _
    $region27: #{tpu_custom_call.1} parent=1 // pred_check_branch
      %59 = sbr.rel (0) target = $region29
    $region28: #{tpu_custom_call.1} parent=1 // pred_region
      %61 = dma.done [#allocation7], 128
    $region29: #{tpu_custom_call.1} parent=1 // pred_fallthru
      _
    %s62 = sld [smem:[#allocation2]]
    %v63 = vld [vmem:[#allocation3] sm:$0xff]
    %v64 = vld [vmem:[#allocation3 + $0x8] sm:$0xff]
    %v65 = vld [vmem:[#allocation3 + $0x10] sm:$0xff]
    %v66 = vld [vmem:[#allocation3 + $0x18] sm:$0xff]
    %v67 = vmax.f32 %v63, 1e-06
    %v68 = vmax.f32 %v64, 1e-06
    %v69 = vmax.f32 %v65, 1e-06
    %v70 = vmax.f32 %v66, 1e-06
    %v71 = vmin.f32 %v67, 0.999999
    %v72 = vmin.f32 %v68, 0.999999
    %v73 = vmin.f32 %v69, 0.999999
    %v74 = vmin.f32 %v70, 0.999999
    %v75 = vld [vmem:[#allocation6] sm:$0xff]
    %v76 = vld [vmem:[#allocation8] sm:$0xff]
    %v77 = vsub.f32 1.0, %v75
    %v78 = vsub.f32 1.0, %v76
    %v79 = vmul.f32 %v71, %v77
    %v80 = vmul.f32 %v73, %v75
    %v81 = vmul.f32 %v79, %v78
    %v82 = vmul.f32 %v73, %v77
    %v83 = vadd.f32 %v81, %v82
    %v84 = vmul.f32 %v71, %v75
    %v85 = vmul.f32 %v79, %v76
    %v86 = vmul.f32 %v80, %v78
    %v87 = vadd.f32 %v85, %v86
    %v88 = vmul.f32 %v72, %v76
    %v89 = vmul.f32 %v80, %v76
    %v90 = vadd.f32 %v88, %v89
    %v91 = vadd.f32 %v90, %v74
    %v92 = vmax.f32 %v83, 1e-06
    %v93 = vmin.f32 %v92, 0.999999
    %v94 = vlog2.pop %v93
    %v95 = vmul.f32 %v94, 0.6931472
    %v96 = vstv %s62
    %v97 = vmul.f32 %v95, %v96
    %v98 = vmax.f32 %v84, 1e-06
    %v99 = vmin.f32 %v98, 0.999999
    %v100 = vlog2.pop %v99
    %v101 = vmul.f32 %v100, 0.6931472
    %v102 = vmul.f32 %v101, %v96
    %v103 = vmax.f32 %v87, 1e-06
    %v104 = vmin.f32 %v103, 0.999999
    %v105 = vlog2.pop %v104
    %v106 = vmul.f32 %v105, 0.6931472
    %v107 = vmul.f32 %v106, %v96
    %v108 = vmax.f32 %v91, 1e-06
    %v109 = vmin.f32 %v108, 0.999999
    %v110 = vlog2.pop %v109
    %v111 = vmul.f32 %v110, 0.6931472
    %v112 = vmul.f32 %v111, %v96
    %v113 = vmax.f32 %v97, %v102
    %v114 = vmax.f32 %v107, %v112
    %v115 = vmax.f32 %v113, %v114
    %v116 = vsub.f32 %v97, %v115
    %v117 = vsub.f32 %v102, %v115
    %v118 = vsub.f32 %v107, %v115
    %v119 = vsub.f32 %v112, %v115
    %v120 = vmul.f32 %v116, 1.442695
    %v121 = vpow.pop %v120
    %v122 = vmul.f32 %v117, 1.442695
    %v123 = vpow.pop %v122
    %v124 = vmul.f32 %v118, 1.442695
    %v125 = vpow.pop %v124
    %v126 = vmul.f32 %v119, 1.442695
    %v127 = vpow.pop %v126
    %v128 = vadd.f32 %v121, %v123
    %v129 = vadd.f32 %v125, %v127
    %v130 = vadd.f32 %v128, %v129
    %v131 = vrcp.pop %v130
    %v132 = vmul.f32 %v130, %v131
    %v133 = vsub.f32 2.0, %v132
    %v134 = vmul.f32 %v131, %v133
    %v135 = vlog2.pop %v130
    %v136 = vmul.f32 %v135, 0.6931472
    %v137 = vmul.f32 %v121, %v134
    %v138 = vmul.f32 %v123, %v134
    %v139 = vmul.f32 %v125, %v134
    %v140 = vmul.f32 %v127, %v134
    %v141 = vsub.f32 %v116, %v136
    %142 = vst [vmem:[#allocation9] sm:$0xff] %v141
    %v143 = vsub.f32 %v117, %v136
    %s144 = scalar_lea.vmem [#allocation9], 8
    %145 = vst [vmem:[%s144] sm:$0xff] %v143
    %v146 = vsub.f32 %v118, %v136
    %s147 = scalar_lea.vmem [#allocation9], 16
    %148 = vst [vmem:[%s147] sm:$0xff] %v146
    %v149 = vsub.f32 %v119, %v136
    %s150 = scalar_lea.vmem [#allocation9], 24
    %151 = vst [vmem:[%s150] sm:$0xff] %v149
    %s152 = scalar_lea.vmem [#allocation9], 32
    %153 = vst [vmem:[%s152] sm:$0xff] %v137
    %s154 = scalar_lea.vmem [#allocation9], 40
    %155 = vst [vmem:[%s154] sm:$0xff] %v138
    %s156 = scalar_lea.vmem [#allocation9], 48
    %157 = vst [vmem:[%s156] sm:$0xff] %v139
    %s158 = scalar_lea.vmem [#allocation9], 56
    %159 = vst [vmem:[%s158] sm:$0xff] %v140
    %v160 = vadd.f32 %v138, %v140
    %s161 = scalar_lea.vmem [#allocation9], 64
    %162 = vst [vmem:[%s161] sm:$0xff] %v160
    // Predicated region
    $region30: #{tpu_custom_call.1} parent=1 // pred_check
      _
    $region31: #{tpu_custom_call.1} parent=1 // pred_check_branch
      %164 = sbr.rel (0) target = $region33
    $region32: #{tpu_custom_call.1} parent=1 // pred_region
      %166 = vsyncadd [#allocation5], 0
      %s167 = sshll.u32 [#allocation9], 4
      %s168 = int_to_ptr.vmem [resolvable:$true] %s167
      %s169 = sshll.u32 %s4, 4
      %s170 = int_to_ptr.hbm [resolvable:$true] %s169
      %175 = dma.vmem_to_hbm [thread:$0]  %s168, 1152, %s170, [#allocation5], 128, 128, 8
    $region33: #{tpu_custom_call.1} parent=1 // pred_fallthru
      _
    // Predicated region
    $region34: #{tpu_custom_call.1} parent=1 // pred_check
      _
    $region35: #{tpu_custom_call.1} parent=1 // pred_check_branch
      %177 = sbr.rel (0) target = $region37
    $region36: #{tpu_custom_call.1} parent=1 // pred_region
      %179 = dma.done [#allocation5], 1152
    $region37: #{tpu_custom_call.1} parent=1 // pred_fallthru
      _
    %180 = vsyncpa [#allocation4], 1
    %181 = vsyncpa [#allocation7], 1
    %182 = vsyncpa [#allocation5], 1

</llo_original>
